<compile_context>
chip_gen: v7x
topology: tpu7x:2x2x1
jax: 0.10.0
libtpu: 0.0.40
codegen_flags: <defaults>
</compile_context>

<pallas_src>
import functools

import jax
import jax.numpy as jnp
import numpy as np
from jax import lax
from jax.experimental import pallas as pl
from jax.experimental.pallas import tpu as pltpu

EPS = 1e-5


def _cw_tcn_kernel(*refs, K, dilation, P, T, use_mxu, has_residual):
    """One (batch b, time-tile l) grid step.

    refs = (x_ref, w_ref, pw_ref, bias_ref[, rw_ref], o_ref, win_ref)
      x_ref    (1, C, T)   current input time tile
      w_ref    (1, K)      shared depthwise FIR taps
      pw_ref   (H, C)      pointwise 1x1 weight with eval-BatchNorm folded in
      bias_ref (H, 2)      col 0: folded pointwise+BN bias, col 1: residual bias
      rw_ref   (H, C)      residual 1x1 weight (only when C != H)
      o_ref    (1, H, T)   output tile
      win_ref  (C, P+T)    VMEM scratch window: [causal history | current tile]
    """
    if has_residual:
        x_ref, w_ref, pw_ref, bias_ref, rw_ref, o_ref, win_ref = refs
    else:
        x_ref, w_ref, pw_ref, bias_ref, o_ref, win_ref = refs
        rw_ref = None

    l = pl.program_id(1)
    H, C = pw_ref.shape

    x_cur = x_ref[0].astype(jnp.float32)                 # (C, T)

    if P > 0:
        # Causal left padding handled in-kernel: zero history at the first tile.
        @pl.when(l == 0)
        def _():
            win_ref[:, :P] = jnp.zeros((C, P), jnp.float32)

    win_ref[:, P:] = x_cur
    win = win_ref[...]                                   # (C, P+T)

    # Shared-weight causal dilated FIR (identical taps for every channel).
    conv = w_ref[:, 0:1] * win[:, :T]
    for k in range(1, K):                                # static unroll over taps
        off = k * dilation
        conv = conv + w_ref[:, k:k + 1] * win[:, off:off + T]

    if P > 0:
        # Carry the last P samples as the causal history for the next time tile.
        win_ref[:, :P] = win[:, T:]

    def mix(weight_ref, inp):
        # 1x1 conv over channels: MXU when C is large enough to be worth it,
        # otherwise a VPU broadcast multiply-accumulate over the C rows.
        if use_mxu:
            return jnp.dot(weight_ref[...], inp, preferred_element_type=jnp.float32)
        out = weight_ref[:, 0:1] * inp[0:1, :]
        for c in range(1, C):
            out = out + weight_ref[:, c:c + 1] * inp[c:c + 1, :]
        return out

    # pointwise 1x1 conv (+ folded BatchNorm) -> ReLU
    act = jnp.maximum(mix(pw_ref, conv) + bias_ref[:, 0:1], 0.0)

    # residual branch
    if has_residual:
        res = mix(rw_ref, x_cur) + bias_ref[:, 1:2]
    else:
        res = x_cur                                      # nn.Identity (C == H)

    o_ref[0] = jnp.maximum(act + res, 0.0).astype(o_ref.dtype)


def fold_params(p, dilation):
    """One-time host-side prep: fold eval BatchNorm into the pointwise conv and
    pack the per-channel bias vectors into a single (H, 2) operand."""
    K = int(p["w"].shape[0])
    H, _ = p["pw_w"].shape
    scale = p["gamma"] / jnp.sqrt(p["var"] + EPS)
    pw_w = (p["pw_w"] * scale[:, None]).astype(jnp.float32)                   # (H, C)
    pw_b = ((p["pw_b"] - p["mu"]) * scale + p["beta"]).astype(jnp.float32)    # (H,)
    has_residual = p.get("rw") is not None
    rb = p["rb"].astype(jnp.float32) if has_residual else jnp.zeros((H,), jnp.float32)
    return dict(
        w=p["w"].astype(jnp.float32).reshape(1, K),                           # (1, K)
        pw_w=pw_w,
        bias=jnp.stack([pw_b, rb], axis=1),                                   # (H, 2)
        rw=(p["rw"].astype(jnp.float32) if has_residual else None),
        dilation=int(dilation),
        kernel_size=K,
    )


def channelwise_tcn_block(x, fp, *, time_tile=512):
    """ChannelWiseTCNBlock.forward (eval mode) as a single Pallas call."""
    N, C, L = x.shape
    K = fp["kernel_size"]
    d = fp["dilation"]
    P = (K - 1) * d
    H, C_w = fp["pw_w"].shape
    assert C_w == C
    has_residual = fp["rw"] is not None
    if not has_residual:
        assert C == H, "identity residual requires in_channels == out_channels"

    # Lane-dense time tiling: full sequence for small L, else 128-multiple tiles.
    # The causal (K-1)*d halo is carried across tiles in VMEM scratch, so no
    # host-side padding pass over x is needed.
    T = L if L <= time_tile else time_tile
    num_t = pl.cdiv(L, T)

    use_mxu = C >= 32

    kernel = functools.partial(
        _cw_tcn_kernel, K=K, dilation=d, P=P, T=T,
        use_mxu=use_mxu, has_residual=has_residual)

    in_specs = [
        pl.BlockSpec((1, C, T), lambda b, l: (b, 0, l)),
        pl.BlockSpec((1, K), lambda b, l: (0, 0)),
        pl.BlockSpec((H, C), lambda b, l: (0, 0)),
        pl.BlockSpec((H, 2), lambda b, l: (0, 0)),
    ]
    args = [x, fp["w"], fp["pw_w"], fp["bias"]]
    if has_residual:
        in_specs.append(pl.BlockSpec((H, C), lambda b, l: (0, 0)))
        args.append(fp["rw"])

    return pl.pallas_call(
        kernel,
        out_shape=jax.ShapeDtypeStruct((N, H, L), x.dtype),
        grid_spec=pltpu.PrefetchScalarGridSpec(
            num_scalar_prefetch=0,
            grid=(N, num_t),
            in_specs=in_specs,
            out_specs=pl.BlockSpec((1, H, T), lambda b, l: (b, 0, l)),
            scratch_shapes=[pltpu.VMEM((C, P + T), jnp.float32)],
        ),
        compiler_params=pltpu.CompilerParams(
            dimension_semantics=("parallel", "arbitrary"),
            vmem_limit_bytes=32 * 1024 * 1024,
        ),
    )(*args)


# ---------------- deterministic parameter init (shapes per module __init__) ---
def init_params(key, c_in, c_out, kernel_size):
    ks = jax.random.split(key, 9)
    return dict(
        # shared_conv.weight is (1, 1, K); stored squeezed (K,), bias=False
        w=0.3 * jax.random.normal(ks[0], (kernel_size,), jnp.float32),
        # pointwise: Conv1d(c_in, c_out, 1) -> weight (c_out, c_in), bias (c_out,)
        pw_w=0.3 * jax.random.normal(ks[1], (c_out, c_in), jnp.float32),
        pw_b=0.1 * jax.random.normal(ks[2], (c_out,), jnp.float32),
        gamma=1.0 + 0.1 * jax.random.normal(ks[3], (c_out,), jnp.float32),
        beta=0.1 * jax.random.normal(ks[4], (c_out,), jnp.float32),
        mu=0.1 * jax.random.normal(ks[5], (c_out,), jnp.float32),
        var=0.5 + jax.random.uniform(ks[6], (c_out,), jnp.float32),
        rw=(0.3 * jax.random.normal(ks[7], (c_out, c_in), jnp.float32)
            if c_in != c_out else None),
        rb=(0.1 * jax.random.normal(ks[8], (c_out,), jnp.float32)
            if c_in != c_out else None),
    )


# ---------------- pure-JAX reference (same eval-mode math) --------------------
def ref_block(x, p, dilation):
    N, C, L = x.shape
    K = p["w"].shape[0]
    P = (K - 1) * dilation
    xp = jnp.pad(x, ((0, 0), (0, 0), (P, 0)))        # causal left pad (chomp of right pad)
    conv = jnp.zeros_like(x)
    for k in range(K):
        conv = conv + p["w"][k] * xp[:, :, k * dilation:k * dilation + L]
    pw = (jnp.einsum("oc,ncl->nol", p["pw_w"], conv,
                     precision=lax.Precision.HIGHEST)
          + p["pw_b"][None, :, None])
    scale = (p["gamma"] / jnp.sqrt(p["var"] + EPS))[None, :, None]
    act = jnp.maximum((pw - p["mu"][None, :, None]) * scale
                      + p["beta"][None, :, None], 0.0)
    if p["rw"] is not None:
        res = (jnp.einsum("oc,ncl->nol", p["rw"], x,
                          precision=lax.Precision.HIGHEST)
               + p["rb"][None, :, None])
    else:
        res = x
    return jnp.maximum(act + res, 0.0)


def _run_case(key, *, N, C_in, C_out, L, K, dilation, time_tile, tol):
    kx, kp = jax.random.split(key)
    x = jax.random.normal(kx, (N, C_in, L), jnp.float32)
    p = init_params(kp, C_in, C_out, K)
    fp = fold_params(p, dilation)

    out = channelwise_tcn_block(x, fp, time_tile=time_tile)
    out = jax.block_until_ready(out)

    ref = ref_block(x, p, dilation)
    np.testing.assert_allclose(np.asarray(out), np.asarray(ref), rtol=tol, atol=tol)
    assert out.shape == (N, C_out, L)


if __name__ == "__main__":
    key = jax.random.PRNGKey(0)
    k1, k2, k3 = jax.random.split(key, 3)

    # residual 1x1-conv path (in_channels != out_channels), tiny shapes
    _run_case(k1, N=2, C_in=4, C_out=32, L=16, K=3, dilation=2,
              time_tile=512, tol=1e-4)
    # identity residual path (in_channels == out_channels)
    _run_case(k2, N=2, C_in=8, C_out=8, L=16, K=3, dilation=1,
              time_tile=512, tol=1e-4)
    # larger channels -> MXU pointwise; 2 time tiles exercising the halo carry
    _run_case(k3, N=2, C_in=64, C_out=128, L=256, K=3, dilation=4,
              time_tile=128, tol=1e-3)

    print("KERNEL_OK")
</pallas_src>

<mosaic_0001>
module attributes {stable_mosaic.version = 11 : i64} {
  func.func @_cw_tcn_kernel(%arg0: i32, %arg1: i32, %arg2: memref<1x4x16xf32, #tpu.memory_space<vmem>>, %arg3: memref<1x3xf32, #tpu.memory_space<vmem>>, %arg4: memref<32x4xf32, #tpu.memory_space<vmem>>, %arg5: memref<32x2xf32, #tpu.memory_space<vmem>>, %arg6: memref<32x4xf32, #tpu.memory_space<vmem>>, %arg7: memref<1x32x16xf32, #tpu.memory_space<vmem>>, %arg8: memref<4x20xf32, #tpu.memory_space<vmem>>) attributes {dimension_semantics = [#tpu.dimension_semantics<parallel>, #tpu.dimension_semantics<arbitrary>], iteration_bounds = array<i64: 2, 1>, scalar_prefetch = 0 : i64, scratch_operands = 1 : i64, tpu.core_type = #tpu.core_type<tc>, window_params = [{transform_indices = @transform_0, window_bounds = array<i64: 1, 4, 16>}, {pipeline_mode = #tpu.pipeline_mode<synchronous>, transform_indices = @transform_1, window_bounds = array<i64: 1, 3>}, {pipeline_mode = #tpu.pipeline_mode<synchronous>, transform_indices = @transform_2, window_bounds = array<i64: 32, 4>}, {pipeline_mode = #tpu.pipeline_mode<synchronous>, transform_indices = @transform_3, window_bounds = array<i64: 32, 2>}, {pipeline_mode = #tpu.pipeline_mode<synchronous>, transform_indices = @transform_4, window_bounds = array<i64: 32, 4>}, {transform_indices = @transform_5, window_bounds = array<i64: 1, 32, 16>}]} {
    %c0 = arith.constant 0 : index
    %c0_0 = arith.constant 0 : index
    %c0_1 = arith.constant 0 : index
    %0 = vector.load %arg2[%c0, %c0_0, %c0_1] : memref<1x4x16xf32, #tpu.memory_space<vmem>>, vector<1x4x16xf32>
    %1 = vector.shape_cast %0 : vector<1x4x16xf32> to vector<4x16xf32>
    %c0_i32 = arith.constant 0 : i32
    %2 = arith.cmpi eq, %arg1, %c0_i32 : i32
    %3 = arith.extui %2 : i1 to i32
    %c0_i32_2 = arith.constant 0 : i32
    %4 = arith.cmpi ne, %3, %c0_i32_2 : i32
    scf.if %4 {
      %cst_35 = arith.constant 0.000000e+00 : f32
      %83 = vector.broadcast %cst_35 : f32 to vector<4x4xf32>
      %c0_36 = arith.constant 0 : index
      %c0_37 = arith.constant 0 : index
      %84 = vector.load %arg8[%c0_36, %c0_37] : memref<4x20xf32, #tpu.memory_space<vmem>>, vector<4x4xf32>
      tpu.vector_store %arg8[%c0_36, %c0_37], %83 {strides = array<i32>} : memref<4x20xf32, #tpu.memory_space<vmem>>, vector<4x4xf32>,
    } else {
    }
    %c0_3 = arith.constant 0 : index
    %c4 = arith.constant 4 : index
    %5 = vector.load %arg8[%c0_3, %c4] : memref<4x20xf32, #tpu.memory_space<vmem>>, vector<4x16xf32>
    tpu.vector_store %arg8[%c0_3, %c4], %1 {strides = array<i32>} : memref<4x20xf32, #tpu.memory_space<vmem>>, vector<4x16xf32>,
    %c0_4 = arith.constant 0 : index
    %c0_5 = arith.constant 0 : index
    %6 = vector.load %arg8[%c0_4, %c0_5] : memref<4x20xf32, #tpu.memory_space<vmem>>, vector<4x20xf32>
    %c0_6 = arith.constant 0 : index
    %c0_7 = arith.constant 0 : index
    %7 = vector.load %arg3[%c0_6, %c0_7] : memref<1x3xf32, #tpu.memory_space<vmem>>, vector<1x1xf32>
    %8 = vector.extract_strided_slice %6 {offsets = [0, 0], sizes = [4, 16], strides = [1, 1]} : vector<4x20xf32> to vector<4x16xf32>
    %9 = vector.broadcast %7 : vector<1x1xf32> to vector<4x16xf32>
    %10 = arith.mulf %9, %8 : vector<4x16xf32>
    %c0_8 = arith.constant 0 : index
    %c1 = arith.constant 1 : index
    %11 = vector.load %arg3[%c0_8, %c1] : memref<1x3xf32, #tpu.memory_space<vmem>>, vector<1x1xf32>
    %12 = vector.extract_strided_slice %6 {offsets = [0, 2], sizes = [4, 16], strides = [1, 1]} : vector<4x20xf32> to vector<4x16xf32>
    %13 = vector.broadcast %11 : vector<1x1xf32> to vector<4x16xf32>
    %14 = arith.mulf %13, %12 : vector<4x16xf32>
    %15 = arith.addf %10, %14 : vector<4x16xf32>
    %c0_9 = arith.constant 0 : index
    %c2 = arith.constant 2 : index
    %16 = vector.load %arg3[%c0_9, %c2] : memref<1x3xf32, #tpu.memory_space<vmem>>, vector<1x1xf32>
    %17 = vector.extract_strided_slice %6 {offsets = [0, 4], sizes = [4, 16], strides = [1, 1]} : vector<4x20xf32> to vector<4x16xf32>
    %18 = vector.broadcast %16 : vector<1x1xf32> to vector<4x16xf32>
    %19 = arith.mulf %18, %17 : vector<4x16xf32>
    %20 = arith.addf %15, %19 : vector<4x16xf32>
    %21 = vector.extract_strided_slice %6 {offsets = [0, 16], sizes = [4, 4], strides = [1, 1]} : vector<4x20xf32> to vector<4x4xf32>
    %c0_10 = arith.constant 0 : index
    %c0_11 = arith.constant 0 : index
    %22 = vector.load %arg8[%c0_10, %c0_11] : memref<4x20xf32, #tpu.memory_space<vmem>>, vector<4x4xf32>
    tpu.vector_store %arg8[%c0_10, %c0_11], %21 {strides = array<i32>} : memref<4x20xf32, #tpu.memory_space<vmem>>, vector<4x4xf32>,
    %c0_12 = arith.constant 0 : index
    %c0_13 = arith.constant 0 : index
    %23 = vector.load %arg4[%c0_12, %c0_13] : memref<32x4xf32, #tpu.memory_space<vmem>>, vector<32x1xf32>
    %24 = vector.extract_strided_slice %20 {offsets = [0, 0], sizes = [1, 16], strides = [1, 1]} : vector<4x16xf32> to vector<1x16xf32>
    %25 = vector.broadcast %23 : vector<32x1xf32> to vector<32x16xf32>
    %26 = vector.broadcast %24 : vector<1x16xf32> to vector<32x16xf32>
    %27 = arith.mulf %25, %26 : vector<32x16xf32>
    %c0_14 = arith.constant 0 : index
    %c1_15 = arith.constant 1 : index
    %28 = vector.load %arg4[%c0_14, %c1_15] : memref<32x4xf32, #tpu.memory_space<vmem>>, vector<32x1xf32>
    %29 = vector.extract_strided_slice %20 {offsets = [1, 0], sizes = [1, 16], strides = [1, 1]} : vector<4x16xf32> to vector<1x16xf32>
    %30 = vector.broadcast %28 : vector<32x1xf32> to vector<32x16xf32>
    %31 = vector.broadcast %29 : vector<1x16xf32> to vector<32x16xf32>
    %32 = arith.mulf %30, %31 : vector<32x16xf32>
    %33 = arith.addf %27, %32 : vector<32x16xf32>
    %c0_16 = arith.constant 0 : index
    %c2_17 = arith.constant 2 : index
    %34 = vector.load %arg4[%c0_16, %c2_17] : memref<32x4xf32, #tpu.memory_space<vmem>>, vector<32x1xf32>
    %35 = vector.extract_strided_slice %20 {offsets = [2, 0], sizes = [1, 16], strides = [1, 1]} : vector<4x16xf32> to vector<1x16xf32>
    %36 = vector.broadcast %34 : vector<32x1xf32> to vector<32x16xf32>
    %37 = vector.broadcast %35 : vector<1x16xf32> to vector<32x16xf32>
    %38 = arith.mulf %36, %37 : vector<32x16xf32>
    %39 = arith.addf %33, %38 : vector<32x16xf32>
    %c0_18 = arith.constant 0 : index
    %c3 = arith.constant 3 : index
    %40 = vector.load %arg4[%c0_18, %c3] : memref<32x4xf32, #tpu.memory_space<vmem>>, vector<32x1xf32>
    %41 = vector.extract_strided_slice %20 {offsets = [3, 0], sizes = [1, 16], strides = [1, 1]} : vector<4x16xf32> to vector<1x16xf32>
    %42 = vector.broadcast %40 : vector<32x1xf32> to vector<32x16xf32>
    %43 = vector.broadcast %41 : vector<1x16xf32> to vector<32x16xf32>
    %44 = arith.mulf %42, %43 : vector<32x16xf32>
    %45 = arith.addf %39, %44 : vector<32x16xf32>
    %c0_19 = arith.constant 0 : index
    %c0_20 = arith.constant 0 : index
    %46 = vector.load %arg5[%c0_19, %c0_20] : memref<32x2xf32, #tpu.memory_space<vmem>>, vector<32x1xf32>
    %47 = vector.broadcast %46 : vector<32x1xf32> to vector<32x16xf32>
    %48 = arith.addf %45, %47 : vector<32x16xf32>
    %cst = arith.constant 0.000000e+00 : f32
    %49 = vector.broadcast %cst : f32 to vector<32x16xf32>
    %50 = arith.maximumf %48, %49 : vector<32x16xf32>
    %c0_21 = arith.constant 0 : index
    %c0_22 = arith.constant 0 : index
    %51 = vector.load %arg6[%c0_21, %c0_22] : memref<32x4xf32, #tpu.memory_space<vmem>>, vector<32x1xf32>
    %52 = vector.extract_strided_slice %1 {offsets = [0, 0], sizes = [1, 16], strides = [1, 1]} : vector<4x16xf32> to vector<1x16xf32>
    %53 = vector.broadcast %51 : vector<32x1xf32> to vector<32x16xf32>
    %54 = vector.broadcast %52 : vector<1x16xf32> to vector<32x16xf32>
    %55 = arith.mulf %53, %54 : vector<32x16xf32>
    %c0_23 = arith.constant 0 : index
    %c1_24 = arith.constant 1 : index
    %56 = vector.load %arg6[%c0_23, %c1_24] : memref<32x4xf32, #tpu.memory_space<vmem>>, vector<32x1xf32>
    %57 = vector.extract_strided_slice %1 {offsets = [1, 0], sizes = [1, 16], strides = [1, 1]} : vector<4x16xf32> to vector<1x16xf32>
    %58 = vector.broadcast %56 : vector<32x1xf32> to vector<32x16xf32>
    %59 = vector.broadcast %57 : vector<1x16xf32> to vector<32x16xf32>
    %60 = arith.mulf %58, %59 : vector<32x16xf32>
    %61 = arith.addf %55, %60 : vector<32x16xf32>
    %c0_25 = arith.constant 0 : index
    %c2_26 = arith.constant 2 : index
    %62 = vector.load %arg6[%c0_25, %c2_26] : memref<32x4xf32, #tpu.memory_space<vmem>>, vector<32x1xf32>
    %63 = vector.extract_strided_slice %1 {offsets = [2, 0], sizes = [1, 16], strides = [1, 1]} : vector<4x16xf32> to vector<1x16xf32>
    %64 = vector.broadcast %62 : vector<32x1xf32> to vector<32x16xf32>
    %65 = vector.broadcast %63 : vector<1x16xf32> to vector<32x16xf32>
    %66 = arith.mulf %64, %65 : vector<32x16xf32>
    %67 = arith.addf %61, %66 : vector<32x16xf32>
    %c0_27 = arith.constant 0 : index
    %c3_28 = arith.constant 3 : index
    %68 = vector.load %arg6[%c0_27, %c3_28] : memref<32x4xf32, #tpu.memory_space<vmem>>, vector<32x1xf32>
    %69 = vector.extract_strided_slice %1 {offsets = [3, 0], sizes = [1, 16], strides = [1, 1]} : vector<4x16xf32> to vector<1x16xf32>
    %70 = vector.broadcast %68 : vector<32x1xf32> to vector<32x16xf32>
    %71 = vector.broadcast %69 : vector<1x16xf32> to vector<32x16xf32>
    %72 = arith.mulf %70, %71 : vector<32x16xf32>
    %73 = arith.addf %67, %72 : vector<32x16xf32>
    %c0_29 = arith.constant 0 : index
    %c1_30 = arith.constant 1 : index
    %74 = vector.load %arg5[%c0_29, %c1_30] : memref<32x2xf32, #tpu.memory_space<vmem>>, vector<32x1xf32>
    %75 = vector.broadcast %74 : vector<32x1xf32> to vector<32x16xf32>
    %76 = arith.addf %73, %75 : vector<32x16xf32>
    %77 = arith.addf %50, %76 : vector<32x16xf32>
    %cst_31 = arith.constant 0.000000e+00 : f32
    %78 = vector.broadcast %cst_31 : f32 to vector<32x16xf32>
    %79 = arith.maximumf %77, %78 : vector<32x16xf32>
    %c0_32 = arith.constant 0 : index
    %c0_33 = arith.constant 0 : index
    %c0_34 = arith.constant 0 : index
    %80 = vector.load %arg7[%c0_32, %c0_33, %c0_34] : memref<1x32x16xf32, #tpu.memory_space<vmem>>, vector<1x32x16xf32>
    %81 = vector.shape_cast %80 : vector<1x32x16xf32> to vector<32x16xf32>
    %82 = vector.shape_cast %79 : vector<32x16xf32> to vector<1x32x16xf32>
    tpu.vector_store %arg7[%c0_32, %c0_33, %c0_34], %82 {strides = array<i32>} : memref<1x32x16xf32, #tpu.memory_space<vmem>>, vector<1x32x16xf32>,
    return
  }
  func.func @transform_0(%arg0: i32, %arg1: i32) -> (i32, i32, i32) {
    %c0_i32 = arith.constant 0 : i32
    %c0_i32_0 = arith.constant 0 : i32
    return %arg0, %c0_i32, %arg1 : i32, i32, i32
  }
  func.func @transform_1(%arg0: i32, %arg1: i32) -> (i32, i32) {
    %c0_i32 = arith.constant 0 : i32
    %c0_i32_0 = arith.constant 0 : i32
    %c0_i32_1 = arith.constant 0 : i32
    return %c0_i32, %c0_i32_0 : i32, i32
  }
  func.func @transform_2(%arg0: i32, %arg1: i32) -> (i32, i32) {
    %c0_i32 = arith.constant 0 : i32
    %c0_i32_0 = arith.constant 0 : i32
    %c0_i32_1 = arith.constant 0 : i32
    return %c0_i32, %c0_i32_0 : i32, i32
  }
  func.func @transform_3(%arg0: i32, %arg1: i32) -> (i32, i32) {
    %c0_i32 = arith.constant 0 : i32
    %c0_i32_0 = arith.constant 0 : i32
    %c0_i32_1 = arith.constant 0 : i32
    return %c0_i32, %c0_i32_0 : i32, i32
  }
  func.func @transform_4(%arg0: i32, %arg1: i32) -> (i32, i32) {
    %c0_i32 = arith.constant 0 : i32
    %c0_i32_0 = arith.constant 0 : i32
    %c0_i32_1 = arith.constant 0 : i32
    return %c0_i32, %c0_i32_0 : i32, i32
  }
  func.func @transform_5(%arg0: i32, %arg1: i32) -> (i32, i32, i32) {
    %c0_i32 = arith.constant 0 : i32
    %c0_i32_0 = arith.constant 0 : i32
    return %arg0, %c0_i32, %arg1 : i32, i32, i32
  }
}

</mosaic_0001>

<llo_original>
// kernel: tpu_custom_call.1
$region0: #{tpu_custom_call.1}
  #allocation0 [shape = 'u32[]', space=smem, size = 0x4, offset = 0x4, fixed_abs, tag = 'smem constant byte address 0x4 - core index']
  #allocation1 [shape = 'u32[144,128]{1,0:T(1,128)}', space=vmem, size = 0x12000, scoped, tag = 'internal scratch']
  #allocation2 [shape = 'f32[4,20]{1,0:T(4,128)}', space=vmem, size = 0x800, scoped, tag = 'scratch operand']
  %s0 = inlined_call_operand.vmem [shape: f32[2,4,16], index: 0, kind: input, shape index: {}]
  %s1 = inlined_call_operand.vmem [shape: f32[1,3], index: 1, kind: input, shape index: {}]
  %s2 = inlined_call_operand.vmem [shape: f32[32,4], index: 2, kind: input, shape index: {}]
  %s3 = inlined_call_operand.vmem [shape: f32[32,2], index: 3, kind: input, shape index: {}]
  %s4 = inlined_call_operand.vmem [shape: f32[32,4], index: 4, kind: input, shape index: {}]
  %s5 = inlined_call_operand.vmem [shape: f32[2,32,16], index: 5, kind: output, shape index: {}]
  %s6 = sld [smem:[#allocation0]]
  $region57: #{tpu_custom_call.1} parent=0
    _
  %s8 = ssub.s32 1, %s6
  %s9 = scalar_select 0, %s8, %s6
  loop: start=0, step=1, limit=4
  $region2: #{tpu_custom_call.1} parent=0 // loop_pre_header
    _
  $region3: #{tpu_custom_call.1} parent=0 // loop_header
    %s11 = sphi 0, %s15
    %p12 = scmp.ge.s32.totalorder %s11, 4
    %s18 = sphi 0, %s30
    %s19 = sphi 0, %s26
    %s20 = sphi 0, %s18
    %s21 = sphi 0, %s19
    %s22 = sphi 0, %s20
    %s23 = sphi 0, %s21
    %s35 = sphi 0, %s37
    %s38 = sphi 0, %s35
    %s39 = sphi 0, %s38
    %s55 = sphi 0, %s39
    %s59 = sphi 0, %s59
    %s61 = sphi 0, %s59
    %s62 = sphi 0, %s61
    %s76 = sphi 0, %s62
    %s80 = sphi 0, %s80
    %s82 = sphi 0, %s80
    %s83 = sphi 0, %s82
    %s97 = sphi 0, %s83
    %s101 = sphi 0, %s101
    %s103 = sphi 0, %s101
    %s104 = sphi 0, %s103
    %s118 = sphi 0, %s104
    %s122 = sphi 0, %s122
    %s124 = sphi 0, %s122
    %s125 = sphi 0, %s124
    %s139 = sphi 0, %s125
    %s147 = sphi 0, %s149
    %s150 = sphi 0, %s147
    %s151 = sphi 0, %s150
    %s167 = sphi 0, %s151
  $region4: #{tpu_custom_call.1} parent=0 // loop_header_branch
    %14 = sbr.rel (%p12) target = $region8
  $region5: #{tpu_custom_call.1} parent=0 // loop_body
    %s16 = ssub.s32 %s11, 1
    %s17 = ssub.s32 %s11, 2
    %s24 = sadd.s32 1, %s19
    %p25 = scmp.ge.s32.totalorder %s24, 1
    %s26 = scalar_select %p25, 0, %s24
    %s27 = sadd.s32 1, %s18
    %s28 = scalar_select %p25, %s27, %s18
    %p29 = scmp.ge.s32.totalorder %s28, 2
    %s30 = scalar_select %p29, 0, %s28
    %s31 = ssub.s32 %s18, %s30
    %s32 = ssub.s32 %s19, %s26
    %s33 = sor.u32 %s31, %s32
    %p34 = scmp.eq.s32.totalorder %s33, 0
    %s36 = sadd.s32 %s35, 1
    %s37 = scalar_select %p34, %s35, %s36
    %p40 = pneg %p34
    %p41 = scmp.eq.s32.totalorder %s11, 1
    %p42 = por %p40, %p41
    %p43 = scmp.ne.s32.totalorder %s35, %s38
    %p44 = scmp.eq.s32.totalorder %s11, 0
    %p45 = por %p43, %p44
    %p46 = scmp.ne.s32.totalorder %s35, %s38
    %p47 = scmp.eq.s32.totalorder %s16, 1
    %p48 = por %p46, %p47
    %p49 = scmp.ne.s32.totalorder %s38, %s39
    %p50 = scmp.eq.s32.totalorder %s16, 0
    %p51 = por %p49, %p50
    %p52 = scmp.ne.s32.totalorder %s38, %s39
    %p53 = scmp.eq.s32.totalorder %s17, 1
    %p54 = por %p52, %p53
    %p56 = scmp.ne.s32.totalorder %s39, %s55
    %p57 = scmp.eq.s32.totalorder %s17, 0
    %p58 = por %p56, %p57
    %s60 = sadd.s32 %s59, 1
    %p63 = scmp.eq.s32.totalorder %s11, 1
    %p64 = scmp.ne.s32.totalorder %s59, %s61
    %p65 = scmp.eq.s32.totalorder %s11, 0
    %p66 = por %p64, %p65
    %p67 = scmp.ne.s32.totalorder %s59, %s61
    %p68 = scmp.eq.s32.totalorder %s16, 1
    %p69 = por %p67, %p68
    %p70 = scmp.ne.s32.totalorder %s61, %s62
    %p71 = scmp.eq.s32.totalorder %s16, 0
    %p72 = por %p70, %p71
    %p73 = scmp.ne.s32.totalorder %s61, %s62
    %p74 = scmp.eq.s32.totalorder %s17, 1
    %p75 = por %p73, %p74
    %p77 = scmp.ne.s32.totalorder %s62, %s76
    %p78 = scmp.eq.s32.totalorder %s17, 0
    %p79 = por %p77, %p78
    %s81 = sadd.s32 %s80, 1
    %p84 = scmp.eq.s32.totalorder %s11, 1
    %p85 = scmp.ne.s32.totalorder %s80, %s82
    %p86 = scmp.eq.s32.totalorder %s11, 0
    %p87 = por %p85, %p86
    %p88 = scmp.ne.s32.totalorder %s80, %s82
    %p89 = scmp.eq.s32.totalorder %s16, 1
    %p90 = por %p88, %p89
    %p91 = scmp.ne.s32.totalorder %s82, %s83
    %p92 = scmp.eq.s32.totalorder %s16, 0
    %p93 = por %p91, %p92
    %p94 = scmp.ne.s32.totalorder %s82, %s83
    %p95 = scmp.eq.s32.totalorder %s17, 1
    %p96 = por %p94, %p95
    %p98 = scmp.ne.s32.totalorder %s83, %s97
    %p99 = scmp.eq.s32.totalorder %s17, 0
    %p100 = por %p98, %p99
    %s102 = sadd.s32 %s101, 1
    %p105 = scmp.eq.s32.totalorder %s11, 1
    %p106 = scmp.ne.s32.totalorder %s101, %s103
    %p107 = scmp.eq.s32.totalorder %s11, 0
    %p108 = por %p106, %p107
    %p109 = scmp.ne.s32.totalorder %s101, %s103
    %p110 = scmp.eq.s32.totalorder %s16, 1
    %p111 = por %p109, %p110
    %p112 = scmp.ne.s32.totalorder %s103, %s104
    %p113 = scmp.eq.s32.totalorder %s16, 0
    %p114 = por %p112, %p113
    %p115 = scmp.ne.s32.totalorder %s103, %s104
    %p116 = scmp.eq.s32.totalorder %s17, 1
    %p117 = por %p115, %p116
    %p119 = scmp.ne.s32.totalorder %s104, %s118
    %p120 = scmp.eq.s32.totalorder %s17, 0
    %p121 = por %p119, %p120
    %s123 = sadd.s32 %s122, 1
    %p126 = scmp.eq.s32.totalorder %s11, 1
    %p127 = scmp.ne.s32.totalorder %s122, %s124
    %p128 = scmp.eq.s32.totalorder %s11, 0
    %p129 = por %p127, %p128
    %p130 = scmp.ne.s32.totalorder %s122, %s124
    %p131 = scmp.eq.s32.totalorder %s16, 1
    %p132 = por %p130, %p131
    %p133 = scmp.ne.s32.totalorder %s124, %s125
    %p134 = scmp.eq.s32.totalorder %s16, 0
    %p135 = por %p133, %p134
    %p136 = scmp.ne.s32.totalorder %s124, %s125
    %p137 = scmp.eq.s32.totalorder %s17, 1
    %p138 = por %p136, %p137
    %p140 = scmp.ne.s32.totalorder %s125, %s139
    %p141 = scmp.eq.s32.totalorder %s17, 0
    %p142 = por %p140, %p141
    %s143 = ssub.s32 %s18, %s30
    %s144 = ssub.s32 %s19, %s26
    %s145 = sor.u32 %s143, %s144
    %p146 = scmp.eq.s32.totalorder %s145, 0
    %s148 = sadd.s32 %s147, 1
    %s149 = scalar_select %p146, %s147, %s148
    %p152 = pneg %p146
    %p153 = scmp.eq.s32.totalorder %s11, 1
    %p154 = por %p152, %p153
    %p155 = scmp.ne.s32.totalorder %s147, %s150
    %p156 = scmp.eq.s32.totalorder %s11, 0
    %p157 = por %p155, %p156
    %p158 = scmp.ne.s32.totalorder %s147, %s150
    %p159 = scmp.eq.s32.totalorder %s16, 1
    %p160 = por %p158, %p159
    %p161 = scmp.ne.s32.totalorder %s150, %s151
    %p162 = scmp.eq.s32.totalorder %s16, 0
    %p163 = por %p161, %p162
    %p164 = scmp.ne.s32.totalorder %s150, %s151
    %p165 = scmp.eq.s32.totalorder %s17, 1
    %p166 = por %p164, %p165
    %p168 = scmp.ne.s32.totalorder %s151, %s167
    %p169 = scmp.eq.s32.totalorder %s17, 0
    %p170 = por %p168, %p169
    %p171 = scmp.le.s32.totalorder 1, %s11
    %p172 = scmp.lt.s32.totalorder %s11, 3
    %p173 = pnand %p171, %p172
    %p174 = pneg %p173
    // Predicated region
    $region9: #{tpu_custom_call.1} parent=5 // pred_check
      _
    $region10: #{tpu_custom_call.1} parent=5 // pred_check_branch
      %176 = sbr.rel (%p173) target = $region12
    $region11: #{tpu_custom_call.1} parent=5 // pred_region
      %s177 = ssub.s32 %s11, 1
      // Predicated region
      $region13: #{tpu_custom_call.1} parent=11 // pred_check
        %p178 = pneg %p72
      $region14: #{tpu_custom_call.1} parent=11 // pred_check_branch
        %180 = sbr.rel (%p178) target = $region16
      $region15: #{tpu_custom_call.1} parent=11 // pred_region
        _
      $region16: #{tpu_custom_call.1} parent=11 // pred_fallthru
        _
      // Predicated region
      $region17: #{tpu_custom_call.1} parent=11 // pred_check
        %p181 = pneg %p93
      $region18: #{tpu_custom_call.1} parent=11 // pred_check_branch
        %183 = sbr.rel (%p181) target = $region20
      $region19: #{tpu_custom_call.1} parent=11 // pred_region
        _
      $region20: #{tpu_custom_call.1} parent=11 // pred_fallthru
        _
      // Predicated region
      $region21: #{tpu_custom_call.1} parent=11 // pred_check
        %p184 = pneg %p114
      $region22: #{tpu_custom_call.1} parent=11 // pred_check_branch
        %186 = sbr.rel (%p184) target = $region24
      $region23: #{tpu_custom_call.1} parent=11 // pred_region
        _
      $region24: #{tpu_custom_call.1} parent=11 // pred_fallthru
        _
      // Predicated region
      $region25: #{tpu_custom_call.1} parent=11 // pred_check
        %p187 = pneg %p135
      $region26: #{tpu_custom_call.1} parent=11 // pred_check_branch
        %189 = sbr.rel (%p187) target = $region28
      $region27: #{tpu_custom_call.1} parent=11 // pred_region
        _
      $region28: #{tpu_custom_call.1} parent=11 // pred_fallthru
        _
    $region12: #{tpu_custom_call.1} parent=5 // pred_fallthru
      _
    %p190 = scmp.lt.s32.totalorder %s11, 2
    // Predicated region
    $region29: #{tpu_custom_call.1} parent=5 // pred_check
      %p191 = pneg %p190
    $region30: #{tpu_custom_call.1} parent=5 // pred_check_branch
      %193 = sbr.rel (%p191) target = $region32
    $region31: #{tpu_custom_call.1} parent=5 // pred_region
      // Predicated region
      $region33: #{tpu_custom_call.1} parent=31 // pred_check
        %p194 = pneg %p45
      $region34: #{tpu_custom_call.1} parent=31 // pred_check_branch
        %196 = sbr.rel (%p194) target = $region36
      $region35: #{tpu_custom_call.1} parent=31 // pred_region
        %p197 = scmp.lt.s32.totalorder %s18, 1
        %s198 = scalar_select %p197, %s18, 1
        %p199 = scmp.lt.s32.totalorder %s19, 0
        %s200 = scalar_select %p199, %s19, 0
        %s201 = sadd.s32 %s200, %s198
        %s202 = smul.addr %s201, 4
        %s203 = scalar_lea.vmem %s0, %s202
      $region36: #{tpu_custom_call.1} parent=31 // pred_fallthru
        _
    $region32: #{tpu_custom_call.1} parent=5 // pred_fallthru
      _
    %p204 = scmp.le.s32.totalorder 1, %s11
    %p205 = scmp.lt.s32.totalorder %s11, 3
    %p206 = pnand %p204, %p205
    %p207 = pneg %p206
    // Predicated region
    $region37: #{tpu_custom_call.1} parent=5 // pred_check
      _
    $region38: #{tpu_custom_call.1} parent=5 // pred_check_branch
      %209 = sbr.rel (%p206) target = $region40
    $region39: #{tpu_custom_call.1} parent=5 // pred_region
      %s210 = ssub.s32 %s11, 1
      %p211 = scmp.lt.s32.totalorder %s20, 1
      %s212 = scalar_select %p211, %s20, 1
      %p213 = scmp.lt.s32.totalorder %s21, 0
      %s214 = scalar_select %p213, %s21, 0
      %s215 = sadd.s32 %s214, %s212
      %s216 = smul.addr %s215, 4
      %s217 = scalar_lea.vmem %s0, %s216
      %p218 = pneg %p51
      %p219 = pneg %p48
      %p220 = pneg %p72
      %p221 = pneg %p69
      %p222 = pneg %p93
      %p223 = pneg %p90
      %p224 = pneg %p114
      %p225 = pneg %p111
      %p226 = pneg %p135
      %p227 = pneg %p132
      %p228 = pneg %p163
      %p229 = pneg %p160
      %p230 = scmp.lt.s32.totalorder %s20, 1
      %s231 = scalar_select %p230, %s20, 1
      %p232 = scmp.lt.s32.totalorder %s21, 0
      %s233 = scalar_select %p232, %s21, 0
      %s234 = smul.addr %s231, 4
      %s235 = sadd.s32 %s233, %s234
      %s236 = smul.addr %s235, 8
      %s237 = scalar_lea.vmem %s5, %s236
      %p238 = scmp.lt.s32.totalorder %s20, 1
      %s239 = scalar_select %p238, %s20, 1
      %p240 = scmp.lt.s32.totalorder %s21, 0
      %s241 = scalar_select %p240, %s21, 0
      %s242 = sadd.s32 %s241, %s239
      %s243 = smul.addr %s242, 4
      %s244 = scalar_lea.vmem %s0, %s243
      %p245 = scmp.lt.s32.totalorder %s20, 1
      %s246 = scalar_select %p245, %s20, 1
      %p247 = scmp.lt.s32.totalorder %s21, 0
      %s248 = scalar_select %p247, %s21, 0
      %s249 = smul.addr %s246, 4
      %s250 = sadd.s32 %s248, %s249
      %s251 = smul.addr %s250, 8
      %s252 = scalar_lea.vmem %s5, %s251
      %v253 = vld [vmem:[%s244] sm:$0xf]
      %p254 = scmp.eq.s32.totalorder %s21, 0
      // Predicated region
      $region41: #{tpu_custom_call.1} parent=39 // pred_check
        %p255 = pneg %p254
      $region42: #{tpu_custom_call.1} parent=39 // pred_check_branch
        %257 = sbr.rel (%p255) target = $region44
      $region43: #{tpu_custom_call.1} parent=39 // pred_region
        %vm258 = vcmask 27648
        %259 = vst.msk [vmem:[#allocation2] sm:$0xf] %vm258, 0.0
      $region44: #{tpu_custom_call.1} parent=39 // pred_fallthru
        _
      %261 = vrot.lane.b32.xlu0 %v253, 4
      %v262 = vpop.permute.xlu0 %261
      %vm264 = vcmask 158752
      %265 = vst.msk [vmem:[#allocation2] sm:$0xf] %vm264, %v262
      %v266 = vld [vmem:[#allocation2] sm:$0xf]
      %v267 = vld [vmem:[%s1] sm:$0x1]
      %v269 = vlaneseq
      %v270 = vshrl.u32 %v269, 7
      %v271 = vsub.s32 0, %v270
      %v272 = vrot.slane %v267, %v271
      %273 = vset.pattern.permute.xlu0 0
      %274 = vperm.xlu0 %273, %v272
      %v275 = vpop.permute.xlu0 %274
      %v277 = vmul.f32 %v275, %v266
      %278 = vset.pattern.permute.xlu0 1
      %279 = vperm.xlu0 %278, %v272
      %v280 = vpop.permute.xlu0 %279
      %v282 = vmul.f32 %v280, %v266
      %284 = vrot.lane.b32.xlu0 %v282, 126
      %v285 = vpop.permute.xlu0 %284
      %v287 = vadd.f32 %v277, %v285
      %288 = vset.pattern.permute.xlu0 2
      %289 = vperm.xlu0 %288, %v272
      %v290 = vpop.permute.xlu0 %289
      %v292 = vmul.f32 %v290, %v266
      %294 = vrot.lane.b32.xlu0 %v292, 124
      %v295 = vpop.permute.xlu0 %294
      %v297 = vadd.f32 %v287, %v295
      %299 = vrot.lane.b32.xlu0 %v266, 112
      %v300 = vpop.permute.xlu0 %299
      %vm302 = vcmask 27648
      %303 = vst.msk [vmem:[#allocation2] sm:$0xf] %vm302, %v300
      %v304 = vld [vmem:[%s2] sm:$0xff]
      %v305 = vld [vmem:[%s2 + $0x8] sm:$0xff]
      %v306 = vld [vmem:[%s2 + $0x10] sm:$0xff]
      %v307 = vld [vmem:[%s2 + $0x18] sm:$0xff]
      %309 = vset.pattern.permute.xlu0 0
      %310 = vperm.xlu0 %309, %v304
      %v311 = vpop.permute.xlu0 %310
      %314 = vset.pattern.permute.xlu0 0
      %315 = vperm.xlu0 %314, %v305
      %v316 = vpop.permute.xlu0 %315
      %319 = vset.pattern.permute.xlu0 0
      %320 = vperm.xlu0 %319, %v306
      %v321 = vpop.permute.xlu0 %320
      %324 = vset.pattern.permute.xlu0 0
      %325 = vperm.xlu0 %324, %v307
      %v326 = vpop.permute.xlu0 %325
      %v328 = vlaneseq
      %v329 = vshrl.u32 %v328, 7
      %v330 = vsub.s32 0, %v329
      %v331 = vrot.slane %v297, %v330
      %v332 = vmul.f32 %v311, %v331
      %v333 = vmul.f32 %v316, %v331
      %v334 = vmul.f32 %v321, %v331
      %v335 = vmul.f32 %v326, %v331
      %336 = vset.pattern.permute.xlu0 1
      %337 = vperm.xlu0 %336, %v304
      %v338 = vpop.permute.xlu0 %337
      %340 = vset.pattern.permute.xlu0 1
      %341 = vperm.xlu0 %340, %v305
      %v342 = vpop.permute.xlu0 %341
      %344 = vset.pattern.permute.xlu0 1
      %345 = vperm.xlu0 %344, %v306
      %v346 = vpop.permute.xlu0 %345
      %348 = vset.pattern.permute.xlu0 1
      %349 = vperm.xlu0 %348, %v307
      %v350 = vpop.permute.xlu0 %349
      %v352 = vlaneseq
      %v353 = vshrl.u32 %v352, 7
      %v354 = vsub.s32 1, %v353
      %v355 = vrot.slane %v297, %v354
      %v356 = vmul.f32 %v338, %v355
      %v357 = vmul.f32 %v342, %v355
      %v358 = vmul.f32 %v346, %v355
      %v359 = vmul.f32 %v350, %v355
      %v360 = vadd.f32 %v332, %v356
      %v361 = vadd.f32 %v333, %v357
      %v362 = vadd.f32 %v334, %v358
      %v363 = vadd.f32 %v335, %v359
      %364 = vset.pattern.permute.xlu0 2
      %365 = vperm.xlu0 %364, %v304
      %v366 = vpop.permute.xlu0 %365
      %368 = vset.pattern.permute.xlu0 2
      %369 = vperm.xlu0 %368, %v305
      %v370 = vpop.permute.xlu0 %369
      %372 = vset.pattern.permute.xlu0 2
      %373 = vperm.xlu0 %372, %v306
      %v374 = vpop.permute.xlu0 %373
      %376 = vset.pattern.permute.xlu0 2
      %377 = vperm.xlu0 %376, %v307
      %v378 = vpop.permute.xlu0 %377
      %v380 = vlaneseq
      %v381 = vshrl.u32 %v380, 7
      %v382 = vsub.s32 2, %v381
      %v383 = vrot.slane %v297, %v382
      %v384 = vmul.f32 %v366, %v383
      %v385 = vmul.f32 %v370, %v383
      %v386 = vmul.f32 %v374, %v383
      %v387 = vmul.f32 %v378, %v383
      %v388 = vadd.f32 %v360, %v384
      %v389 = vadd.f32 %v361, %v385
      %v390 = vadd.f32 %v362, %v386
      %v391 = vadd.f32 %v363, %v387
      %392 = vset.pattern.permute.xlu0 3
      %393 = vperm.xlu0 %392, %v304
      %v394 = vpop.permute.xlu0 %393
      %396 = vset.pattern.permute.xlu0 3
      %397 = vperm.xlu0 %396, %v305
      %v398 = vpop.permute.xlu0 %397
      %400 = vset.pattern.permute.xlu0 3
      %401 = vperm.xlu0 %400, %v306
      %v402 = vpop.permute.xlu0 %401
      %404 = vset.pattern.permute.xlu0 3
      %405 = vperm.xlu0 %404, %v307
      %v406 = vpop.permute.xlu0 %405
      %v408 = vlaneseq
      %v409 = vshrl.u32 %v408, 7
      %v410 = vsub.s32 3, %v409
      %v411 = vrot.slane %v297, %v410
      %v412 = vmul.f32 %v394, %v411
      %v413 = vmul.f32 %v398, %v411
      %v414 = vmul.f32 %v402, %v411
      %v415 = vmul.f32 %v406, %v411
      %v416 = vadd.f32 %v388, %v412
      %v417 = vadd.f32 %v389, %v413
      %v418 = vadd.f32 %v390, %v414
      %v419 = vadd.f32 %v391, %v415
      %v420 = vld [vmem:[%s3] sm:$0xff]
      %v421 = vld [vmem:[%s3 + $0x8] sm:$0xff]
      %v422 = vld [vmem:[%s3 + $0x10] sm:$0xff]
      %v423 = vld [vmem:[%s3 + $0x18] sm:$0xff]
      %425 = vset.pattern.permute.xlu0 0
      %426 = vperm.xlu0 %425, %v420
      %v427 = vpop.permute.xlu0 %426
      %430 = vset.pattern.permute.xlu0 0
      %431 = vperm.xlu0 %430, %v421
      %v432 = vpop.permute.xlu0 %431
      %435 = vset.pattern.permute.xlu0 0
      %436 = vperm.xlu0 %435, %v422
      %v437 = vpop.permute.xlu0 %436
      %440 = vset.pattern.permute.xlu0 0
      %441 = vperm.xlu0 %440, %v423
      %v442 = vpop.permute.xlu0 %441
      %v444 = vadd.f32 %v416, %v427
      %v445 = vadd.f32 %v417, %v432
      %v446 = vadd.f32 %v418, %v437
      %v447 = vadd.f32 %v419, %v442
      %v448 = vmax.f32 %v444, 0.0
      %v449 = vmax.f32 %v445, 0.0
      %v450 = vmax.f32 %v446, 0.0
      %v451 = vmax.f32 %v447, 0.0
      %v452 = vld [vmem:[%s4] sm:$0xff]
      %v453 = vld [vmem:[%s4 + $0x8] sm:$0xff]
      %v454 = vld [vmem:[%s4 + $0x10] sm:$0xff]
      %v455 = vld [vmem:[%s4 + $0x18] sm:$0xff]
      %457 = vset.pattern.permute.xlu0 0
      %458 = vperm.xlu0 %457, %v452
      %v459 = vpop.permute.xlu0 %458
      %462 = vset.pattern.permute.xlu0 0
      %463 = vperm.xlu0 %462, %v453
      %v464 = vpop.permute.xlu0 %463
      %467 = vset.pattern.permute.xlu0 0
      %468 = vperm.xlu0 %467, %v454
      %v469 = vpop.permute.xlu0 %468
      %472 = vset.pattern.permute.xlu0 0
      %473 = vperm.xlu0 %472, %v455
      %v474 = vpop.permute.xlu0 %473
      %v476 = vlaneseq
      %v477 = vshrl.u32 %v476, 7
      %v478 = vsub.s32 0, %v477
      %v479 = vrot.slane %v253, %v478
      %v480 = vmul.f32 %v459, %v479
      %v481 = vmul.f32 %v464, %v479
      %v482 = vmul.f32 %v469, %v479
      %v483 = vmul.f32 %v474, %v479
      %484 = vset.pattern.permute.xlu0 1
      %485 = vperm.xlu0 %484, %v452
      %v486 = vpop.permute.xlu0 %485
      %488 = vset.pattern.permute.xlu0 1
      %489 = vperm.xlu0 %488, %v453
      %v490 = vpop.permute.xlu0 %489
      %492 = vset.pattern.permute.xlu0 1
      %493 = vperm.xlu0 %492, %v454
      %v494 = vpop.permute.xlu0 %493
      %496 = vset.pattern.permute.xlu0 1
      %497 = vperm.xlu0 %496, %v455
      %v498 = vpop.permute.xlu0 %497
      %v500 = vlaneseq
      %v501 = vshrl.u32 %v500, 7
      %v502 = vsub.s32 1, %v501
      %v503 = vrot.slane %v253, %v502
      %v504 = vmul.f32 %v486, %v503
      %v505 = vmul.f32 %v490, %v503
      %v506 = vmul.f32 %v494, %v503
      %v507 = vmul.f32 %v498, %v503
      %v508 = vadd.f32 %v480, %v504
      %v509 = vadd.f32 %v481, %v505
      %v510 = vadd.f32 %v482, %v506
      %v511 = vadd.f32 %v483, %v507
      %512 = vset.pattern.permute.xlu0 2
      %513 = vperm.xlu0 %512, %v452
      %v514 = vpop.permute.xlu0 %513
      %516 = vset.pattern.permute.xlu0 2
      %517 = vperm.xlu0 %516, %v453
      %v518 = vpop.permute.xlu0 %517
      %520 = vset.pattern.permute.xlu0 2
      %521 = vperm.xlu0 %520, %v454
      %v522 = vpop.permute.xlu0 %521
      %524 = vset.pattern.permute.xlu0 2
      %525 = vperm.xlu0 %524, %v455
      %v526 = vpop.permute.xlu0 %525
      %v528 = vlaneseq
      %v529 = vshrl.u32 %v528, 7
      %v530 = vsub.s32 2, %v529
      %v531 = vrot.slane %v253, %v530
      %v532 = vmul.f32 %v514, %v531
      %v533 = vmul.f32 %v518, %v531
      %v534 = vmul.f32 %v522, %v531
      %v535 = vmul.f32 %v526, %v531
      %v536 = vadd.f32 %v508, %v532
      %v537 = vadd.f32 %v509, %v533
      %v538 = vadd.f32 %v510, %v534
      %v539 = vadd.f32 %v511, %v535
      %540 = vset.pattern.permute.xlu0 3
      %541 = vperm.xlu0 %540, %v452
      %v542 = vpop.permute.xlu0 %541
      %544 = vset.pattern.permute.xlu0 3
      %545 = vperm.xlu0 %544, %v453
      %v546 = vpop.permute.xlu0 %545
      %548 = vset.pattern.permute.xlu0 3
      %549 = vperm.xlu0 %548, %v454
      %v550 = vpop.permute.xlu0 %549
      %552 = vset.pattern.permute.xlu0 3
      %553 = vperm.xlu0 %552, %v455
      %v554 = vpop.permute.xlu0 %553
      %v556 = vlaneseq
      %v557 = vshrl.u32 %v556, 7
      %v558 = vsub.s32 3, %v557
      %v559 = vrot.slane %v253, %v558
      %v560 = vmul.f32 %v542, %v559
      %v561 = vmul.f32 %v546, %v559
      %v562 = vmul.f32 %v550, %v559
      %v563 = vmul.f32 %v554, %v559
      %v564 = vadd.f32 %v536, %v560
      %v565 = vadd.f32 %v537, %v561
      %v566 = vadd.f32 %v538, %v562
      %v567 = vadd.f32 %v539, %v563
      %568 = vset.pattern.permute.xlu0 1
      %569 = vperm.xlu0 %568, %v420
      %v570 = vpop.permute.xlu0 %569
      %572 = vset.pattern.permute.xlu0 1
      %573 = vperm.xlu0 %572, %v421
      %v574 = vpop.permute.xlu0 %573
      %576 = vset.pattern.permute.xlu0 1
      %577 = vperm.xlu0 %576, %v422
      %v578 = vpop.permute.xlu0 %577
      %580 = vset.pattern.permute.xlu0 1
      %581 = vperm.xlu0 %580, %v423
      %v582 = vpop.permute.xlu0 %581
      %v584 = vadd.f32 %v564, %v570
      %v585 = vadd.f32 %v565, %v574
      %v586 = vadd.f32 %v566, %v578
      %v587 = vadd.f32 %v567, %v582
      %v588 = vadd.f32 %v448, %v584
      %v589 = vadd.f32 %v449, %v585
      %v590 = vadd.f32 %v450, %v586
      %v591 = vadd.f32 %v451, %v587
      %v592 = vmax.f32 %v588, 0.0
      %v593 = vmax.f32 %v589, 0.0
      %v594 = vmax.f32 %v590, 0.0
      %v595 = vmax.f32 %v591, 0.0
      %vm596 = vcmask 130048
      %597 = vst.msk [vmem:[%s252] sm:$0xff] %vm596, %v592
      %598 = vst.msk [vmem:[%s252 + $0x8] sm:$0xff] %vm596, %v593
      %599 = vst.msk [vmem:[%s252 + $0x10] sm:$0xff] %vm596, %v594
      %600 = vst.msk [vmem:[%s252 + $0x18] sm:$0xff] %vm596, %v595
      %p601 = scmp.lt.s32.totalorder %s20, 1
      %s602 = scalar_select %p601, %s20, 1
      %p603 = scmp.lt.s32.totalorder %s21, 0
      %s604 = scalar_select %p603, %s21, 0
      %s605 = smul.addr %s602, 4
      %s606 = sadd.s32 %s604, %s605
      %s607 = smul.addr %s606, 8
      %s608 = scalar_lea.vmem %s5, %s607
      // Predicated region
      $region45: #{tpu_custom_call.1} parent=39 // pred_check
        %p609 = pneg %p160
      $region46: #{tpu_custom_call.1} parent=39 // pred_check_branch
        %611 = sbr.rel (%p609) target = $region48
      $region47: #{tpu_custom_call.1} parent=39 // pred_region
        _
      $region48: #{tpu_custom_call.1} parent=39 // pred_fallthru
        _
    $region40: #{tpu_custom_call.1} parent=5 // pred_fallthru
      _
    %p612 = scmp.le.s32.totalorder 2, %s11
    // Predicated region
    $region49: #{tpu_custom_call.1} parent=5 // pred_check
      %p613 = pneg %p612
    $region50: #{tpu_custom_call.1} parent=5 // pred_check_branch
      %615 = sbr.rel (%p613) target = $region52
    $region51: #{tpu_custom_call.1} parent=5 // pred_region
      %s616 = ssub.s32 %s11, 2
      // Predicated region
      $region53: #{tpu_custom_call.1} parent=51 // pred_check
        %p617 = pneg %p166
      $region54: #{tpu_custom_call.1} parent=51 // pred_check_branch
        %619 = sbr.rel (%p617) target = $region56
      $region55: #{tpu_custom_call.1} parent=51 // pred_region
        %p620 = scmp.lt.s32.totalorder %s22, 1
        %s621 = scalar_select %p620, %s22, 1
        %p622 = scmp.lt.s32.totalorder %s23, 0
        %s623 = scalar_select %p622, %s23, 0
        %s624 = smul.addr %s621, 4
        %s625 = sadd.s32 %s623, %s624
        %s626 = smul.addr %s625, 8
        %s627 = scalar_lea.vmem %s5, %s626
      $region56: #{tpu_custom_call.1} parent=51 // pred_fallthru
        _
    $region52: #{tpu_custom_call.1} parent=5 // pred_fallthru
      _
  $region6: #{tpu_custom_call.1} parent=0 // loop_footer
    %s15 = sadd.s32 1, %s11
  $region7: #{tpu_custom_call.1} parent=0 // loop_footer_branch
    %10 = sbr.rel target = $region3
  $region8: #{tpu_custom_call.1} parent=0 // loop_exit
    _

</llo_original>
